<compile_context>
chip_gen: v6e
topology: v6e:2x2x1
jax: 0.10.0
libtpu: 0.0.40
codegen_flags: <defaults>
</compile_context>

<pallas_src>
import functools
import math

import jax
import jax.numpy as jnp
from jax.experimental import pallas as pl
from jax.experimental.pallas import tpu as pltpu

_MAX_TILE_BYTES = 1 << 20  # ~1 MiB per stream per buffer (fits all generations)


def _pid_kernel(kp, ki, kd, has_ff, *refs):
    """Fused PID update on one (TB, D) tile (steady state, integral present).

    new_integ = integ + error
    out       = (kp+ki)*error + ki*integ + kd*error_dot [+ ff]
    """
    if has_ff:
        error_ref, error_dot_ref, integ_ref, ff_ref, out_ref, new_integ_ref = refs
    else:
        error_ref, error_dot_ref, integ_ref, out_ref, new_integ_ref = refs
        ff_ref = None

    err = error_ref[...]
    integ = integ_ref[...]
    new_integ_ref[...] = integ + err
    out = (kp + ki) * err + ki * integ + kd * error_dot_ref[...]
    if ff_ref is not None:
        out = out + ff_ref[...]
    out_ref[...] = out


def _pid_init_kernel(kp, ki, kd, has_ff, *refs):
    """First-step variant: integral starts at zero, so it is not streamed in.

    new_integ = error
    out       = (kp+ki)*error + kd*error_dot [+ ff]
    """
    if has_ff:
        error_ref, error_dot_ref, ff_ref, out_ref, new_integ_ref = refs
    else:
        error_ref, error_dot_ref, out_ref, new_integ_ref = refs
        ff_ref = None

    err = error_ref[...]
    new_integ_ref[...] = err
    out = (kp + ki) * err + kd * error_dot_ref[...]
    if ff_ref is not None:
        out = out + ff_ref[...]
    out_ref[...] = out


def _choose_row_tile(rows, row_bytes):
    """Largest row tile (multiple of 8 sublanes) within the per-stream budget."""
    tb = max(1, _MAX_TILE_BYTES // max(1, row_bytes))
    if tb >= rows:
        return rows
    return max(8, (tb // 8) * 8)


def _flatten_2d(shape):
    """Map arbitrary-rank shape -> (rows, cols) keeping the last dim on lanes."""
    if len(shape) == 0:
        return 1, 1
    if len(shape) == 1:
        return 1, shape[0]
    return math.prod(shape[:-1]), shape[-1]


def _pid_call(kernel_body, operands, rows, cols, dtype, alias_integral):
    itemsize = jnp.dtype(dtype).itemsize
    tb = _choose_row_tile(rows, cols * itemsize)
    grid = (pl.cdiv(rows, tb),)
    spec = pl.BlockSpec((tb, cols), lambda i: (i, 0))

    aliases = {2: 1} if alias_integral else {}
    return pl.pallas_call(
        kernel_body,
        out_shape=(jax.ShapeDtypeStruct((rows, cols), dtype),   # PID output
                   jax.ShapeDtypeStruct((rows, cols), dtype)),  # updated integral
        grid=grid,
        in_specs=[spec] * len(operands),
        out_specs=(spec, spec),
        # Alias the integral-state input onto the new-integral output
        # -> in-place accumulation, no extra HBM footprint per step.
        input_output_aliases=aliases,
        compiler_params=pltpu.CompilerParams(
            dimension_semantics=("parallel",)),
    )(*operands)


def pid_step(error, error_dot, integrity, ff=None, *, kp, ki, kd):
    """One PID forward step. `integrity=None` means 'integral is zero'.

    Returns (output, new_integrity).
    """
    assert error.shape == error_dot.shape
    if integrity is not None:
        assert integrity.shape == error.shape
    if ff is not None:
        assert ff.shape == error.shape

    shape = error.shape
    dtype = error.dtype
    rows, cols = _flatten_2d(shape)

    def to2d(x):
        return x.astype(dtype).reshape(rows, cols)

    has_ff = ff is not None
    if integrity is None:
        # First step: integral is identically zero -> skip that HBM stream.
        operands = [to2d(error), to2d(error_dot)]
        if has_ff:
            operands.append(to2d(ff))
        body = functools.partial(_pid_init_kernel,
                                 float(kp), float(ki), float(kd), has_ff)
        out, new_integ = _pid_call(body, operands, rows, cols, dtype,
                                   alias_integral=False)
    else:
        operands = [to2d(error), to2d(error_dot), to2d(integrity)]
        if has_ff:
            operands.append(to2d(ff))
        body = functools.partial(_pid_kernel,
                                 float(kp), float(ki), float(kd), has_ff)
        out, new_integ = _pid_call(body, operands, rows, cols, dtype,
                                   alias_integral=True)

    return out.reshape(shape), new_integ.reshape(shape)


class PID:
    """Functional-state Python wrapper mirroring the PyTorch nn.Module."""

    def __init__(self, kp, ki, kd):
        self.kp = kp
        self.ki = ki
        self.kd = kd
        self.integrity_initialized = False
        self.integrity = None

    def forward(self, error, error_dot, ff=None):
        integ = self.integrity if self.integrity_initialized else None
        out, self.integrity = pid_step(
            error, error_dot, integ, ff,
            kp=self.kp, ki=self.ki, kd=self.kd)
        self.integrity_initialized = True
        return out

    def reset(self):
        self.integrity = None
        self.integrity_initialized = False


if __name__ == "__main__":
    # Deterministic gains (module __init__ takes scalar gains).
    kp, ki, kd = 2.0, 0.5, 0.1
    pid = PID(kp, ki, kd)

    # Small shapes consistent with an elementwise PID on batched state errors.
    B, D = 8, 128  # layout: [batch, feature]; feature sits on the lane axis
    key = jax.random.PRNGKey(0)
    k1, k2, k3, k4 = jax.random.split(key, 4)
    error1 = jax.random.normal(k1, (B, D), dtype=jnp.float32)
    error_dot1 = jax.random.normal(k2, (B, D), dtype=jnp.float32)
    error2 = jax.random.normal(k3, (B, D), dtype=jnp.float32)
    error_dot2 = jax.random.normal(k4, (B, D), dtype=jnp.float32)

    # Two steps to exercise the persistent integral state (ff=None, then ff).
    out1 = pid.forward(error1, error_dot1)           # init + no-ff variant
    ff = 0.25 * jnp.ones((B, D), dtype=jnp.float32)
    out2 = pid.forward(error2, error_dot2, ff=ff)    # steady-state + ff variant
    jax.block_until_ready(out2)

    # Pure-JAX reference check.
    integ_ref = jnp.zeros((B, D), jnp.float32)
    integ_ref = integ_ref + error1
    ref1 = kp * error1 + ki * integ_ref + kd * error_dot1
    integ_ref = integ_ref + error2
    ref2 = kp * error2 + ki * integ_ref + kd * error_dot2 + ff

    assert jnp.allclose(out1, ref1, atol=1e-5, rtol=1e-5)
    assert jnp.allclose(out2, ref2, atol=1e-5, rtol=1e-5)
    assert jnp.allclose(pid.integrity, integ_ref, atol=1e-5, rtol=1e-5)

    # Also exercise a multi-tile case (forces grid > 1 with pipelining) and a
    # second step so the aliased in-place integral path is covered at scale.
    big_pid = PID(kp, ki, kd)
    kb1, kb2 = jax.random.split(jax.random.PRNGKey(1), 2)
    be = jax.random.normal(kb1, (2048, 256), dtype=jnp.float32)
    bed = jax.random.normal(kb2, (2048, 256), dtype=jnp.float32)
    bout1 = big_pid.forward(be, bed)
    bout2 = big_pid.forward(be, bed)
    jax.block_until_ready(bout2)
    bref1 = kp * be + ki * be + kd * bed           # integral == error after step 1
    bref2 = kp * be + ki * (2.0 * be) + kd * bed   # integral == 2*error after step 2
    assert jnp.allclose(bout1, bref1, atol=1e-4, rtol=1e-4)
    assert jnp.allclose(bout2, bref2, atol=1e-4, rtol=1e-4)

    print("KERNEL_OK")
</pallas_src>

<mosaic_0001>
module attributes {stable_mosaic.version = 11 : i64} {
  func.func @_pid_init_kernel(%arg0: i32, %arg1: memref<8x128xf32, #tpu.memory_space<vmem>>, %arg2: memref<8x128xf32, #tpu.memory_space<vmem>>, %arg3: memref<8x128xf32, #tpu.memory_space<vmem>>, %arg4: memref<8x128xf32, #tpu.memory_space<vmem>>) attributes {dimension_semantics = [#tpu.dimension_semantics<parallel>], iteration_bounds = array<i64: 1>, scalar_prefetch = 0 : i64, scratch_operands = 0 : i64, tpu.core_type = #tpu.core_type<tc>, window_params = [{transform_indices = @transform_0, window_bounds = array<i64: 8, 128>}, {transform_indices = @transform_1, window_bounds = array<i64: 8, 128>}, {transform_indices = @transform_2, window_bounds = array<i64: 8, 128>}, {transform_indices = @transform_3, window_bounds = array<i64: 8, 128>}]} {
    %c0 = arith.constant 0 : index
    %c0_0 = arith.constant 0 : index
    %0 = vector.load %arg1[%c0, %c0_0] : memref<8x128xf32, #tpu.memory_space<vmem>>, vector<8x128xf32>
    %c0_1 = arith.constant 0 : index
    %c0_2 = arith.constant 0 : index
    %1 = vector.load %arg4[%c0_1, %c0_2] : memref<8x128xf32, #tpu.memory_space<vmem>>, vector<8x128xf32>
    tpu.vector_store %arg4[%c0_1, %c0_2], %0 {strides = array<i32>} : memref<8x128xf32, #tpu.memory_space<vmem>>, vector<8x128xf32>,
    %cst = arith.constant 2.500000e+00 : f32
    %2 = vector.broadcast %cst : f32 to vector<8x128xf32>
    %3 = arith.mulf %2, %0 : vector<8x128xf32>
    %c0_3 = arith.constant 0 : index
    %c0_4 = arith.constant 0 : index
    %4 = vector.load %arg2[%c0_3, %c0_4] : memref<8x128xf32, #tpu.memory_space<vmem>>, vector<8x128xf32>
    %cst_5 = arith.constant 1.000000e-01 : f32
    %5 = vector.broadcast %cst_5 : f32 to vector<8x128xf32>
    %6 = arith.mulf %5, %4 : vector<8x128xf32>
    %7 = arith.addf %3, %6 : vector<8x128xf32>
    %c0_6 = arith.constant 0 : index
    %c0_7 = arith.constant 0 : index
    %8 = vector.load %arg3[%c0_6, %c0_7] : memref<8x128xf32, #tpu.memory_space<vmem>>, vector<8x128xf32>
    tpu.vector_store %arg3[%c0_6, %c0_7], %7 {strides = array<i32>} : memref<8x128xf32, #tpu.memory_space<vmem>>, vector<8x128xf32>,
    return
  }
  func.func @transform_0(%arg0: i32) -> (i32, i32) {
    %c0_i32 = arith.constant 0 : i32
    %c0_i32_0 = arith.constant 0 : i32
    return %arg0, %c0_i32 : i32, i32
  }
  func.func @transform_1(%arg0: i32) -> (i32, i32) {
    %c0_i32 = arith.constant 0 : i32
    %c0_i32_0 = arith.constant 0 : i32
    return %arg0, %c0_i32 : i32, i32
  }
  func.func @transform_2(%arg0: i32) -> (i32, i32) {
    %c0_i32 = arith.constant 0 : i32
    %c0_i32_0 = arith.constant 0 : i32
    return %arg0, %c0_i32 : i32, i32
  }
  func.func @transform_3(%arg0: i32) -> (i32, i32) {
    %c0_i32 = arith.constant 0 : i32
    %c0_i32_0 = arith.constant 0 : i32
    return %arg0, %c0_i32 : i32, i32
  }
}

</mosaic_0001>

<llo_original>
// kernel: tpu_custom_call.1
$region0: #{tpu_custom_call.1}
  #allocation0 [shape = 'u32[]', space=smem, size = 0x4, offset = 0x4, fixed_abs, tag = 'smem constant byte address 0x4 - core index']
  #allocation1 [shape = 'u32[144,128]{1,0:T(1,128)}', space=vmem, size = 0x12000, scoped, tag = 'internal scratch']
  %s0 = inlined_call_operand.hbm [shape: f32[8,128], index: 0, kind: input, shape index: {}]
  %s1 = inlined_call_operand.hbm [shape: f32[8,128], index: 1, kind: input, shape index: {}]
  %s2 = inlined_call_operand.hbm [shape: f32[8,128], index: 2, kind: output, shape index: {0}]
  %s3 = inlined_call_operand.hbm [shape: f32[8,128], index: 3, kind: output, shape index: {1}]
  %4 = xla_tuple %s2, %s3
  %s5 = sld [smem:[#allocation0]]
  $region34: #{tpu_custom_call.1} parent=0
    _
  %s7 = ssub.s32 1, %s5
  %s8 = scalar_select 0, %s7, %s5
  $region1: #{tpu_custom_call.1} parent=0
    #allocation2 [shape = 'u8[4096]{0}', space=vmem, size = 0x1000, scoped, tag = 'input window, operand 0, single buffered']
    #allocation3 [shape = 's32[1]{0}', space=sflag, size = 0x4, scoped, tag = 'scoped memory for tpu_custom_call.1']
    #allocation4 [shape = 's32[1]{0}', space=sflag, size = 0x4, scoped, tag = 'scoped memory for tpu_custom_call.1']
    #allocation5 [shape = 'u8[4096]{0}', space=vmem, size = 0x1000, scoped, tag = 'input window, operand 1, single buffered']
    #allocation6 [shape = 's32[1]{0}', space=sflag, size = 0x4, scoped, tag = 'scoped memory for tpu_custom_call.1']
    #allocation7 [shape = 'u8[4096]{0}', space=vmem, size = 0x1000, scoped, tag = 'output window, operand 0, single buffered']
    #allocation8 [shape = 'u8[4096]{0}', space=vmem, size = 0x1000, scoped, tag = 'output window, operand 1, single buffered']
    #allocation9 [shape = 's32[1]{0}', space=sflag, size = 0x4, scoped, tag = 'scoped memory for tpu_custom_call.1']
    %9 = vsyncpa [#allocation3], 0
    %10 = vsyncpa [#allocation6], 0
    %11 = vsyncpa [#allocation4], 0
    %12 = vsyncpa [#allocation9], 0
    // Predicated region
    $region2: #{tpu_custom_call.1} parent=1 // pred_check
      _
    $region3: #{tpu_custom_call.1} parent=1 // pred_check_branch
      %14 = sbr.rel (0) target = $region5
    $region4: #{tpu_custom_call.1} parent=1 // pred_region
      %s16 = ssub.s32 128, 128
      %17 = vsyncadd [#allocation3], %s16
      %s19 = sshll.u32 [#allocation2], 4
      %s20 = int_to_ptr.vmem [resolvable:$true] %s19
      %22 = dma.hbm_to_vmem [thread:$0]  %s0, 128, %s20, [#allocation3]
    $region5: #{tpu_custom_call.1} parent=1 // pred_fallthru
      _
    // Predicated region
    $region6: #{tpu_custom_call.1} parent=1 // pred_check
      _
    $region7: #{tpu_custom_call.1} parent=1 // pred_check_branch
      %24 = sbr.rel (0) target = $region9
    $region8: #{tpu_custom_call.1} parent=1 // pred_region
      %s26 = ssub.s32 128, 128
      %27 = vsyncadd [#allocation6], %s26
      %s29 = sshll.u32 [#allocation5], 4
      %s30 = int_to_ptr.vmem [resolvable:$true] %s29
      %32 = dma.hbm_to_vmem [thread:$0]  %s1, 128, %s30, [#allocation6]
    $region9: #{tpu_custom_call.1} parent=1 // pred_fallthru
      _
    // Predicated region
    $region10: #{tpu_custom_call.1} parent=1 // pred_check
      _
    $region11: #{tpu_custom_call.1} parent=1 // pred_check_branch
      %34 = sbr.rel (0) target = $region13
    $region12: #{tpu_custom_call.1} parent=1 // pred_region
      %35 = dma.done [#allocation3], 128
    $region13: #{tpu_custom_call.1} parent=1 // pred_fallthru
      _
    // Predicated region
    $region14: #{tpu_custom_call.1} parent=1 // pred_check
      _
    $region15: #{tpu_custom_call.1} parent=1 // pred_check_branch
      %37 = sbr.rel (0) target = $region17
    $region16: #{tpu_custom_call.1} parent=1 // pred_region
      %38 = dma.done [#allocation6], 128
    $region17: #{tpu_custom_call.1} parent=1 // pred_fallthru
      _
    %v39 = vld [vmem:[#allocation2] sm:$0xff]
    %40 = vst [vmem:[#allocation8] sm:$0xff] %v39
    %v41 = vmul.f32 %v39, 2.5
    %v42 = vld [vmem:[#allocation5] sm:$0xff]
    %v43 = vmul.f32 %v42, 0.1
    %v44 = vadd.f32 %v41, %v43
    %45 = vst [vmem:[#allocation7] sm:$0xff] %v44
    // Predicated region
    $region18: #{tpu_custom_call.1} parent=1 // pred_check
      _
    $region19: #{tpu_custom_call.1} parent=1 // pred_check_branch
      %47 = sbr.rel (0) target = $region21
    $region20: #{tpu_custom_call.1} parent=1 // pred_region
      %s49 = ssub.s32 128, 128
      %50 = vsyncadd [#allocation4], %s49
      %s52 = sshll.u32 [#allocation7], 4
      %s53 = int_to_ptr.vmem [resolvable:$true] %s52
      %55 = dma.vmem_to_hbm [thread:$0]  %s53, 128, %s2, [#allocation4]
    $region21: #{tpu_custom_call.1} parent=1 // pred_fallthru
      _
    // Predicated region
    $region22: #{tpu_custom_call.1} parent=1 // pred_check
      _
    $region23: #{tpu_custom_call.1} parent=1 // pred_check_branch
      %57 = sbr.rel (0) target = $region25
    $region24: #{tpu_custom_call.1} parent=1 // pred_region
      %s59 = ssub.s32 128, 128
      %60 = vsyncadd [#allocation9], %s59
      %s62 = sshll.u32 [#allocation8], 4
      %s63 = int_to_ptr.vmem [resolvable:$true] %s62
      %65 = dma.vmem_to_hbm [thread:$0]  %s63, 128, %s3, [#allocation9]
    $region25: #{tpu_custom_call.1} parent=1 // pred_fallthru
      _
    // Predicated region
    $region26: #{tpu_custom_call.1} parent=1 // pred_check
      _
    $region27: #{tpu_custom_call.1} parent=1 // pred_check_branch
      %67 = sbr.rel (0) target = $region29
    $region28: #{tpu_custom_call.1} parent=1 // pred_region
      %68 = dma.done [#allocation4], 128
    $region29: #{tpu_custom_call.1} parent=1 // pred_fallthru
      _
    // Predicated region
    $region30: #{tpu_custom_call.1} parent=1 // pred_check
      _
    $region31: #{tpu_custom_call.1} parent=1 // pred_check_branch
      %70 = sbr.rel (0) target = $region33
    $region32: #{tpu_custom_call.1} parent=1 // pred_region
      %71 = dma.done [#allocation9], 128
    $region33: #{tpu_custom_call.1} parent=1 // pred_fallthru
      _
    %72 = vsyncpa [#allocation3], 1
    %73 = vsyncpa [#allocation6], 1
    %74 = vsyncpa [#allocation4], 1
    %75 = vsyncpa [#allocation9], 1

</llo_original>
